<compile_context>
chip_gen: v6e
topology: v6e:2x2x1
jax: 0.10.0
libtpu: 0.0.40
codegen_flags: <defaults>
</compile_context>

<pallas_src>
import math

import jax
import jax.numpy as jnp
import numpy as np
from jax.experimental import pallas as pl
from jax.experimental.pallas import tpu as pltpu


def _fused_stack_mask_kernel(m_ref, *refs):
    """refs = (feat_ref_0, ..., feat_ref_{M-1}, out_ref).

    m_ref:     (Bb, 1, Lanes)        pooled (and lane-tiled) mask for this batch tile
    feat refs: (Bb, Cf_i, Lanes)     per-modality features (channels possibly lane-folded)
    out_ref:   (Bb, Cf_total, Lanes) masked, channel-stacked features
    """
    out_ref = refs[-1]
    feat_refs = refs[:-1]
    m = m_ref[...]                          # (Bb, 1, Lanes) -> broadcasts over channels
    off = 0
    for f_ref in feat_refs:                 # small static python loop, unrolled at trace time
        c = int(f_ref.shape[1])
        # TODO(synk): if a folded per-modality channel count is not a multiple of 8 the second+
        # writes are sub-tile (masked) stores; padding C_i would need an extra strip pass.
        out_ref[:, off:off + c, :] = f_ref[...] * m   # static slice -> zero-cost ref view
        off += c


def _adaptive_max_pool1d(x, out_size):
    """PyTorch F.adaptive_max_pool1d semantics on a (N, L) array -> (N, out_size)."""
    n, length = x.shape
    t_out = int(out_size)
    if length == t_out:
        return x
    if length % t_out == 0:
        return x.reshape(n, t_out, length // t_out).max(axis=-1)
    # General (non-divisible) case: bin t covers [floor(t*L/T), ceil((t+1)*L/T)).
    t = jnp.arange(t_out)
    start = (t * length) // t_out
    end = ((t + 1) * length + t_out - 1) // t_out
    l = jnp.arange(length)
    sel = (l[None, :] >= start[:, None]) & (l[None, :] < end[:, None])   # (T, L), tiny
    if jnp.issubdtype(x.dtype, jnp.floating):
        sentinel = jnp.finfo(x.dtype).min
    else:
        sentinel = jnp.iinfo(x.dtype).min
    return jnp.max(jnp.where(sel[None, :, :], x[:, None, :], sentinel), axis=-1)


def _round_up(x, m):
    return -(-x // m) * m


def _vmem_physical_bytes():
    """Best-effort physical-VMEM query; conservative (v7x = 64 MiB) fallback."""
    try:
        info = pltpu.get_tpu_info()
        for attr in ("vmem_capacity_bytes", "vmem_bytes", "vmem_size_bytes"):
            v = getattr(info, attr, None)
            if v:
                return int(v)
    except Exception:
        pass
    return 64 << 20


def multimodality_fusion_neck(fusion_feature_dict, masks, clip_seg_num):
    """JAX/Pallas equivalent of MultiModalityFusionNeck.forward (stack mode, no sub-module).

    fusion_feature_dict: dict of [N, C_i, clip_seg_num] arrays
    masks:               [N, 1, L]
    returns:             [N, sum(C_i), clip_seg_num]
    """
    # TODO(synk): fusion_neck_module is None in this config; only the `feature * masks` path
    # is implemented (matches the reference module with fusion_neck_module=None).
    feats = [v for _, v in fusion_feature_dict.items()]   # same order as _stack_feature
    n, _, t = feats[0].shape
    assert t == clip_seg_num, "feature temporal dim must equal clip_seg_num"
    for f in feats:
        assert f.ndim == 3 and f.shape[0] == n and f.shape[2] == clip_seg_num
    assert masks.ndim == 3 and masks.shape[0] == n and masks.shape[1] == 1

    c_list = [int(f.shape[1]) for f in feats]
    c_total = sum(c_list)
    # Match torch promotion of `feature * masks` (e.g. int features * float mask -> float).
    out_dtype = jnp.result_type(*([f.dtype for f in feats] + [masks.dtype]))
    itemsize = jnp.dtype(out_dtype).itemsize

    # Hoisted adaptive max-pool (tiny: N*L elements), computed once in the wrapper.
    pooled = _adaptive_max_pool1d(masks[:, 0, :].astype(out_dtype), clip_seg_num)   # (N, T)

    # ---- Lane-dense channel fold: (N, C_i, T) -> (N, C_i/g, g*T) with g*T % 128 == 0. ----
    g = 1
    if t % 128 != 0:
        g_cand = 128 // math.gcd(t, 128)
        if all(c % g_cand == 0 for c in c_list):
            g = g_cand
    lanes = g * t
    cf_list = [c // g for c in c_list]
    cf_total = c_total // g
    feats_k = [f.astype(out_dtype).reshape(n, cf, lanes)       # contiguous reshape: free view
               for f, cf in zip(feats, cf_list)]
    if g > 1:
        mask_k = jnp.tile(pooled, (1, g))[:, None, :]          # (N, 1, g*T), tiny
    else:
        mask_k = pooled[:, None, :]                            # (N, 1, T)

    # ---- Padded per-batch-row VMEM footprint (real (sublane, lane) tile sizes). ----
    sub_mult = {4: 8, 2: 16, 1: 32}.get(itemsize, 8)
    lane_pad = _round_up(lanes, 128)

    def _row_bytes(c_dim):
        return _round_up(max(int(c_dim), 1), sub_mult) * lane_pad * itemsize

    per_row = _row_bytes(1)                                    # pooled mask block
    per_row += sum(_row_bytes(cf) for cf in cf_list)           # per-modality blocks
    per_row += _row_bytes(cf_total)                            # output block

    # ---- Generation-aware block target / scoped-VMEM cap. ----
    phys_vmem = _vmem_physical_bytes()
    if phys_vmem >= (96 << 20):            # v5e / v6e: 128 MiB physical
        max_scoped = 48 << 20
        target_block_bytes = 12 << 20
    else:                                  # v7x: 64 MiB physical per TC
        max_scoped = 40 << 20
        target_block_bytes = 8 << 20

    # ---- Batch tile: near the byte target, >=2 grid steps (v7x has 2 TCs), ragged OK. ----
    min_steps = 2 if n > 1 else 1
    bb_cap_steps = -(-n // min_steps)
    slack = 2 << 20
    bb = max(1, min(target_block_bytes // per_row, bb_cap_steps))
    bb = min(bb, max(1, (max_scoped - slack) // (2 * per_row)))   # double-buffered fit
    bb = int(bb)
    grid = (int(-(-n // bb)),)                                    # cdiv: last block may be ragged

    est_vmem = 2 * bb * per_row + slack
    vmem_limit = None
    if est_vmem > (14 << 20):              # only raise above the smallest per-gen default
        vmem_limit = int(min(max_scoped, est_vmem + (4 << 20)))

    in_specs = [pl.BlockSpec((bb, 1, lanes), lambda b: (b, 0, 0))]             # pooled mask
    in_specs += [pl.BlockSpec((bb, cf, lanes), lambda b: (b, 0, 0))            # each modality
                 for cf in cf_list]
    out_specs = pl.BlockSpec((bb, cf_total, lanes), lambda b: (b, 0, 0))

    grid_spec = pltpu.PrefetchScalarGridSpec(
        num_scalar_prefetch=0,
        grid=grid,
        in_specs=in_specs,
        out_specs=out_specs,
    )

    compiler_kwargs = dict(dimension_semantics=("parallel",))
    if vmem_limit is not None:
        compiler_kwargs["vmem_limit_bytes"] = vmem_limit

    cost = pl.CostEstimate(
        flops=int(n * c_total * t),
        transcendentals=0,
        bytes_accessed=int(2 * n * c_total * t * itemsize + n * lanes * itemsize),
    )

    out = pl.pallas_call(
        _fused_stack_mask_kernel,
        out_shape=jax.ShapeDtypeStruct((n, cf_total, lanes), out_dtype),
        grid_spec=grid_spec,
        compiler_params=pltpu.CompilerParams(**compiler_kwargs),
        cost_estimate=cost,
    )(mask_k, *feats_k)

    if g > 1:
        out = out.reshape(n, c_total, t)   # contiguous reshape back: free view
    return out


if __name__ == "__main__":
    key = jax.random.PRNGKey(0)
    k1, k2, k3, k4, k5, k6 = jax.random.split(key, 6)

    def np_adaptive_max_pool1d(x, t_out):
        n, length = x.shape
        out = np.empty((n, t_out), dtype=x.dtype)
        for t in range(t_out):
            s = (t * length) // t_out
            e = -(-((t + 1) * length) // t_out)    # ceil((t+1)*L / T)
            out[:, t] = x[:, s:e].max(axis=1)
        return out

    def run_case(n, c_rgb, c_flow, clip_seg_num, mask_len, kf1, kf2, km):
        fusion_feature_dict = {
            "rgb": jax.random.normal(kf1, (n, c_rgb, clip_seg_num), dtype=jnp.float32),
            "flow": jax.random.normal(kf2, (n, c_flow, clip_seg_num), dtype=jnp.float32),
        }
        masks = (jax.random.uniform(km, (n, 1, mask_len)) > 0.3).astype(jnp.float32)

        out = multimodality_fusion_neck(fusion_feature_dict, masks, clip_seg_num)
        out = jax.block_until_ready(out)

        feat_ref = np.concatenate([np.asarray(v) for v in fusion_feature_dict.values()], axis=1)
        pooled_ref = np_adaptive_max_pool1d(np.asarray(masks)[:, 0, :], clip_seg_num)
        ref = feat_ref * pooled_ref[:, None, :]

        assert out.shape == (n, c_rgb + c_flow, clip_seg_num)
        np.testing.assert_allclose(np.asarray(out), ref, rtol=1e-6, atol=1e-6)

    # Case 1: lane-foldable channels (g=16 -> 128-lane dense blocks), divisible mask pooling.
    run_case(n=2, c_rgb=64, c_flow=32, clip_seg_num=8, mask_len=32, kf1=k1, kf2=k2, km=k3)

    # Case 2: non-foldable tiny channels (fallback NCT layout), odd batch (ragged cdiv grid),
    # non-divisible mask pooling.
    run_case(n=3, c_rgb=4, c_flow=4, clip_seg_num=8, mask_len=36, kf1=k4, kf2=k5, km=k6)

    print("KERNEL_OK")
</pallas_src>

<mosaic_0001>
module attributes {stable_mosaic.version = 11 : i64} {
  func.func @_fused_stack_mask_kernel(%arg0: i32, %arg1: memref<1x1x128xf32, #tpu.memory_space<vmem>>, %arg2: memref<1x4x128xf32, #tpu.memory_space<vmem>>, %arg3: memref<1x2x128xf32, #tpu.memory_space<vmem>>, %arg4: memref<1x6x128xf32, #tpu.memory_space<vmem>>) attributes {dimension_semantics = [#tpu.dimension_semantics<parallel>], iteration_bounds = array<i64: 2>, scalar_prefetch = 0 : i64, scratch_operands = 0 : i64, tpu.core_type = #tpu.core_type<tc>, window_params = [{transform_indices = @transform_0, window_bounds = array<i64: 1, 1, 128>}, {transform_indices = @transform_1, window_bounds = array<i64: 1, 4, 128>}, {transform_indices = @transform_2, window_bounds = array<i64: 1, 2, 128>}, {transform_indices = @transform_3, window_bounds = array<i64: 1, 6, 128>}]} {
    %c0 = arith.constant 0 : index
    %c0_0 = arith.constant 0 : index
    %c0_1 = arith.constant 0 : index
    %0 = vector.load %arg1[%c0, %c0_0, %c0_1] : memref<1x1x128xf32, #tpu.memory_space<vmem>>, vector<1x1x128xf32>
    %c0_2 = arith.constant 0 : index
    %c0_3 = arith.constant 0 : index
    %c0_4 = arith.constant 0 : index
    %1 = vector.load %arg2[%c0_2, %c0_3, %c0_4] : memref<1x4x128xf32, #tpu.memory_space<vmem>>, vector<1x4x128xf32>
    %2 = vector.broadcast %0 : vector<1x1x128xf32> to vector<1x4x128xf32>
    %3 = arith.mulf %1, %2 : vector<1x4x128xf32>
    %c0_5 = arith.constant 0 : index
    %c0_6 = arith.constant 0 : index
    %c0_7 = arith.constant 0 : index
    %4 = vector.load %arg4[%c0_5, %c0_6, %c0_7] : memref<1x6x128xf32, #tpu.memory_space<vmem>>, vector<1x4x128xf32>
    tpu.vector_store %arg4[%c0_5, %c0_6, %c0_7], %3 {strides = array<i32>} : memref<1x6x128xf32, #tpu.memory_space<vmem>>, vector<1x4x128xf32>,
    %c0_8 = arith.constant 0 : index
    %c0_9 = arith.constant 0 : index
    %c0_10 = arith.constant 0 : index
    %5 = vector.load %arg3[%c0_8, %c0_9, %c0_10] : memref<1x2x128xf32, #tpu.memory_space<vmem>>, vector<1x2x128xf32>
    %6 = vector.broadcast %0 : vector<1x1x128xf32> to vector<1x2x128xf32>
    %7 = arith.mulf %5, %6 : vector<1x2x128xf32>
    %c0_11 = arith.constant 0 : index
    %c4 = arith.constant 4 : index
    %c0_12 = arith.constant 0 : index
    %8 = vector.load %arg4[%c0_11, %c4, %c0_12] : memref<1x6x128xf32, #tpu.memory_space<vmem>>, vector<1x2x128xf32>
    tpu.vector_store %arg4[%c0_11, %c4, %c0_12], %7 {strides = array<i32>} : memref<1x6x128xf32, #tpu.memory_space<vmem>>, vector<1x2x128xf32>,
    return
  }
  func.func @transform_0(%arg0: i32) -> (i32, i32, i32) {
    %c0_i32 = arith.constant 0 : i32
    %c0_i32_0 = arith.constant 0 : i32
    %c0_i32_1 = arith.constant 0 : i32
    return %arg0, %c0_i32, %c0_i32_0 : i32, i32, i32
  }
  func.func @transform_1(%arg0: i32) -> (i32, i32, i32) {
    %c0_i32 = arith.constant 0 : i32
    %c0_i32_0 = arith.constant 0 : i32
    %c0_i32_1 = arith.constant 0 : i32
    return %arg0, %c0_i32, %c0_i32_0 : i32, i32, i32
  }
  func.func @transform_2(%arg0: i32) -> (i32, i32, i32) {
    %c0_i32 = arith.constant 0 : i32
    %c0_i32_0 = arith.constant 0 : i32
    %c0_i32_1 = arith.constant 0 : i32
    return %arg0, %c0_i32, %c0_i32_0 : i32, i32, i32
  }
  func.func @transform_3(%arg0: i32) -> (i32, i32, i32) {
    %c0_i32 = arith.constant 0 : i32
    %c0_i32_0 = arith.constant 0 : i32
    %c0_i32_1 = arith.constant 0 : i32
    return %arg0, %c0_i32, %c0_i32_0 : i32, i32, i32
  }
}

</mosaic_0001>

<llo_original>
// kernel: tpu_custom_call.1
$region0: #{tpu_custom_call.1}
  #allocation0 [shape = 'u32[]', space=smem, size = 0x4, offset = 0x4, fixed_abs, tag = 'smem constant byte address 0x4 - core index']
  #allocation1 [shape = 'u32[144,128]{1,0:T(1,128)}', space=vmem, size = 0x12000, scoped, tag = 'internal scratch']
  %s0 = inlined_call_operand.hbm [shape: f32[2,1,128], index: 0, kind: input, shape index: {}]
  %s1 = inlined_call_operand.hbm [shape: f32[2,4,128], index: 1, kind: input, shape index: {}]
  %s2 = inlined_call_operand.hbm [shape: f32[2,2,128], index: 2, kind: input, shape index: {}]
  %s3 = inlined_call_operand.vmem [shape: f32[2,6,128], index: 3, kind: output, shape index: {}]
  %s4 = sld [smem:[#allocation0]]
  $region57: #{tpu_custom_call.1} parent=0
    _
  %s6 = ssub.s32 1, %s4
  %s7 = scalar_select 0, %s6, %s4
  $region1: #{tpu_custom_call.1} parent=0
    #allocation2 [shape = 'u8[1024]{0}', space=vmem, size = 0x400, scoped, tag = 'input window, operand 0']
    #allocation3 [shape = 's32[2]{0}', space=sflag, size = 0x8, scoped, tag = 'scoped memory for tpu_custom_call.1']
    #allocation4 [shape = 'u8[4096]{0}', space=vmem, size = 0x1000, scoped, tag = 'input window, operand 1']
    #allocation5 [shape = 's32[2]{0}', space=sflag, size = 0x8, scoped, tag = 'scoped memory for tpu_custom_call.1']
    #allocation6 [shape = 'u8[2048]{0}', space=vmem, size = 0x800, scoped, tag = 'input window, operand 2']
    %8 = vsyncpa [#allocation3], 0
    %s9 = scalar_lea.sflag [#allocation3], 1
    %10 = vsyncpa %s9, 0
    %11 = vsyncpa [#allocation5], 0
    %s12 = scalar_lea.sflag [#allocation5], 1
    %13 = vsyncpa %s12, 0
    loop: start=0, step=1, limit=4
    $region2: #{tpu_custom_call.1} parent=1 // loop_pre_header
      _
    $region3: #{tpu_custom_call.1} parent=1 // loop_header
      %s15 = sphi 0, %s19
      %p16 = scmp.ge.s32.totalorder %s15, 4
      %s25 = sphi 0, %s27
      %s28 = sphi 0, %s25
      %s29 = sphi 0, %s28
      %s45 = sphi 0, %s29
      %s51 = sphi 0, %s53
      %s54 = sphi 0, %s51
      %s55 = sphi 0, %s54
      %s71 = sphi 0, %s55
      %s77 = sphi 0, %s79
      %s80 = sphi 0, %s77
      %s81 = sphi 0, %s80
      %s97 = sphi 0, %s81
      %s103 = sphi 0, %s105
      %s106 = sphi 0, %s103
      %s107 = sphi 0, %s106
      %s123 = sphi 0, %s107
    $region4: #{tpu_custom_call.1} parent=1 // loop_header_branch
      %18 = sbr.rel (%p16) target = $region8
    $region5: #{tpu_custom_call.1} parent=1 // loop_body
      %s20 = ssub.s32 %s15, 1
      %s21 = ssub.s32 %s15, 2
      %s22 = sadd.s32 %s15, 1
      %s23 = ssub.s32 %s15, %s22
      %p24 = scmp.eq.s32.totalorder %s23, 0
      %s26 = sadd.s32 %s25, 1
      %s27 = scalar_select %p24, %s25, %s26
      %p30 = pneg %p24
      %p31 = scmp.eq.s32.totalorder %s15, 1
      %p32 = por %p30, %p31
      %p33 = scmp.ne.s32.totalorder %s25, %s28
      %p34 = scmp.eq.s32.totalorder %s15, 0
      %p35 = por %p33, %p34
      %p36 = scmp.ne.s32.totalorder %s25, %s28
      %p37 = scmp.eq.s32.totalorder %s20, 1
      %p38 = por %p36, %p37
      %p39 = scmp.ne.s32.totalorder %s28, %s29
      %p40 = scmp.eq.s32.totalorder %s20, 0
      %p41 = por %p39, %p40
      %p42 = scmp.ne.s32.totalorder %s28, %s29
      %p43 = scmp.eq.s32.totalorder %s21, 1
      %p44 = por %p42, %p43
      %p46 = scmp.ne.s32.totalorder %s29, %s45
      %p47 = scmp.eq.s32.totalorder %s21, 0
      %p48 = por %p46, %p47
      %s49 = ssub.s32 %s15, %s22
      %p50 = scmp.eq.s32.totalorder %s49, 0
      %s52 = sadd.s32 %s51, 1
      %s53 = scalar_select %p50, %s51, %s52
      %p56 = pneg %p50
      %p57 = scmp.eq.s32.totalorder %s15, 1
      %p58 = por %p56, %p57
      %p59 = scmp.ne.s32.totalorder %s51, %s54
      %p60 = scmp.eq.s32.totalorder %s15, 0
      %p61 = por %p59, %p60
      %p62 = scmp.ne.s32.totalorder %s51, %s54
      %p63 = scmp.eq.s32.totalorder %s20, 1
      %p64 = por %p62, %p63
      %p65 = scmp.ne.s32.totalorder %s54, %s55
      %p66 = scmp.eq.s32.totalorder %s20, 0
      %p67 = por %p65, %p66
      %p68 = scmp.ne.s32.totalorder %s54, %s55
      %p69 = scmp.eq.s32.totalorder %s21, 1
      %p70 = por %p68, %p69
      %p72 = scmp.ne.s32.totalorder %s55, %s71
      %p73 = scmp.eq.s32.totalorder %s21, 0
      %p74 = por %p72, %p73
      %s75 = ssub.s32 %s15, %s22
      %p76 = scmp.eq.s32.totalorder %s75, 0
      %s78 = sadd.s32 %s77, 1
      %s79 = scalar_select %p76, %s77, %s78
      %p82 = pneg %p76
      %p83 = scmp.eq.s32.totalorder %s15, 1
      %p84 = por %p82, %p83
      %p85 = scmp.ne.s32.totalorder %s77, %s80
      %p86 = scmp.eq.s32.totalorder %s15, 0
      %p87 = por %p85, %p86
      %p88 = scmp.ne.s32.totalorder %s77, %s80
      %p89 = scmp.eq.s32.totalorder %s20, 1
      %p90 = por %p88, %p89
      %p91 = scmp.ne.s32.totalorder %s80, %s81
      %p92 = scmp.eq.s32.totalorder %s20, 0
      %p93 = por %p91, %p92
      %p94 = scmp.ne.s32.totalorder %s80, %s81
      %p95 = scmp.eq.s32.totalorder %s21, 1
      %p96 = por %p94, %p95
      %p98 = scmp.ne.s32.totalorder %s81, %s97
      %p99 = scmp.eq.s32.totalorder %s21, 0
      %p100 = por %p98, %p99
      %s101 = ssub.s32 %s15, %s22
      %p102 = scmp.eq.s32.totalorder %s101, 0
      %s104 = sadd.s32 %s103, 1
      %s105 = scalar_select %p102, %s103, %s104
      %p108 = pneg %p102
      %p109 = scmp.eq.s32.totalorder %s15, 1
      %p110 = por %p108, %p109
      %p111 = scmp.ne.s32.totalorder %s103, %s106
      %p112 = scmp.eq.s32.totalorder %s15, 0
      %p113 = por %p111, %p112
      %p114 = scmp.ne.s32.totalorder %s103, %s106
      %p115 = scmp.eq.s32.totalorder %s20, 1
      %p116 = por %p114, %p115
      %p117 = scmp.ne.s32.totalorder %s106, %s107
      %p118 = scmp.eq.s32.totalorder %s20, 0
      %p119 = por %p117, %p118
      %p120 = scmp.ne.s32.totalorder %s106, %s107
      %p121 = scmp.eq.s32.totalorder %s21, 1
      %p122 = por %p120, %p121
      %p124 = scmp.ne.s32.totalorder %s107, %s123
      %p125 = scmp.eq.s32.totalorder %s21, 0
      %p126 = por %p124, %p125
      %p127 = scmp.le.s32.totalorder 1, %s15
      %p128 = scmp.lt.s32.totalorder %s15, 3
      %p129 = pnand %p127, %p128
      %p130 = pneg %p129
      // Predicated region
      $region9: #{tpu_custom_call.1} parent=5 // pred_check
        _
      $region10: #{tpu_custom_call.1} parent=5 // pred_check_branch
        %132 = sbr.rel (%p129) target = $region12
      $region11: #{tpu_custom_call.1} parent=5 // pred_region
        %s133 = ssub.s32 %s15, 1
      $region12: #{tpu_custom_call.1} parent=5 // pred_fallthru
        _
      %p134 = scmp.lt.s32.totalorder %s15, 2
      // Predicated region
      $region13: #{tpu_custom_call.1} parent=5 // pred_check
        %p135 = pneg %p134
      $region14: #{tpu_custom_call.1} parent=5 // pred_check_branch
        %137 = sbr.rel (%p135) target = $region16
      $region15: #{tpu_custom_call.1} parent=5 // pred_region
        // Predicated region
        $region17: #{tpu_custom_call.1} parent=15 // pred_check
          %p138 = pneg %p35
        $region18: #{tpu_custom_call.1} parent=15 // pred_check_branch
          %140 = sbr.rel (%p138) target = $region20
        $region19: #{tpu_custom_call.1} parent=15 // pred_region
          %s141 = sand.u32 %s25, 1
          %s142 = scalar_lea.sflag [#allocation3], %s141
          %s143 = sand.u32 %s25, 1
          %s144 = scalar_lea.vmem [#allocation2], %s143
          %s146 = ssub.s32 16, 16
          %147 = vsyncadd %s142, %s146
          %s148 = smul.addr %s15, 16
          %s149 = scalar_lea.hbm %s0, %s148
          %s151 = sshll.u32 %s144, 4
          %s152 = int_to_ptr.vmem [resolvable:$true] %s151
          %154 = dma.hbm_to_vmem [thread:$0]  %s149, 16, %s152, %s142
        $region20: #{tpu_custom_call.1} parent=15 // pred_fallthru
          _
        // Predicated region
        $region21: #{tpu_custom_call.1} parent=15 // pred_check
          %p155 = pneg %p61
        $region22: #{tpu_custom_call.1} parent=15 // pred_check_branch
          %157 = sbr.rel (%p155) target = $region24
        $region23: #{tpu_custom_call.1} parent=15 // pred_region
          %s158 = sand.u32 %s15, 1
          %s159 = scalar_lea.sflag [#allocation5], %s158
          %s160 = sand.u32 %s51, 1
          %s161 = smul.addr %s160, 4
          %s162 = scalar_lea.vmem [#allocation4], %s161
          %s164 = ssub.s32 64, 64
          %165 = vsyncadd %s159, %s164
          %s166 = smul.addr %s15, 64
          %s167 = scalar_lea.hbm %s1, %s166
          %s169 = sshll.u32 %s162, 4
          %s170 = int_to_ptr.vmem [resolvable:$true] %s169
          %172 = dma.hbm_to_vmem [thread:$0]  %s167, 64, %s170, %s159
        $region24: #{tpu_custom_call.1} parent=15 // pred_fallthru
          _
        // Predicated region
        $region25: #{tpu_custom_call.1} parent=15 // pred_check
          %p173 = pneg %p87
        $region26: #{tpu_custom_call.1} parent=15 // pred_check_branch
          %175 = sbr.rel (%p173) target = $region28
        $region27: #{tpu_custom_call.1} parent=15 // pred_region
          %s176 = sand.u32 %s15, 1
          %s177 = scalar_lea.sflag [#allocation5], %s176
          %s178 = sand.u32 %s77, 1
          %s179 = smul.addr %s178, 2
          %s180 = scalar_lea.vmem [#allocation6], %s179
          %s182 = ssub.s32 32, 32
          %183 = vsyncadd %s177, %s182
          %s184 = smul.addr %s15, 32
          %s185 = scalar_lea.hbm %s2, %s184
          %s187 = sshll.u32 %s180, 4
          %s188 = int_to_ptr.vmem [resolvable:$true] %s187
          %190 = dma.hbm_to_vmem [thread:$0]  %s185, 32, %s188, %s177
        $region28: #{tpu_custom_call.1} parent=15 // pred_fallthru
          _
      $region16: #{tpu_custom_call.1} parent=5 // pred_fallthru
        _
      %p191 = scmp.le.s32.totalorder 1, %s15
      %p192 = scmp.lt.s32.totalorder %s15, 3
      %p193 = pnand %p191, %p192
      %p194 = pneg %p193
      // Predicated region
      $region29: #{tpu_custom_call.1} parent=5 // pred_check
        _
      $region30: #{tpu_custom_call.1} parent=5 // pred_check_branch
        %196 = sbr.rel (%p193) target = $region32
      $region31: #{tpu_custom_call.1} parent=5 // pred_region
        %s197 = ssub.s32 %s15, 1
        %s198 = sand.u32 %s28, 1
        %s199 = scalar_lea.sflag [#allocation3], %s198
        %s200 = sand.u32 %s28, 1
        %s201 = scalar_lea.vmem [#allocation2], %s200
        // Predicated region
        $region33: #{tpu_custom_call.1} parent=31 // pred_check
          %p202 = pneg %p41
        $region34: #{tpu_custom_call.1} parent=31 // pred_check_branch
          %204 = sbr.rel (%p202) target = $region36
        $region35: #{tpu_custom_call.1} parent=31 // pred_region
          %205 = dma.done %s199, 16
        $region36: #{tpu_custom_call.1} parent=31 // pred_fallthru
          _
        %s206 = sand.u32 %s20, 1
        %s207 = scalar_lea.sflag [#allocation5], %s206
        %s208 = sand.u32 %s54, 1
        %s209 = smul.addr %s208, 4
        %s210 = scalar_lea.vmem [#allocation4], %s209
        // Predicated region
        $region37: #{tpu_custom_call.1} parent=31 // pred_check
          %p211 = pneg %p67
        $region38: #{tpu_custom_call.1} parent=31 // pred_check_branch
          %213 = sbr.rel (%p211) target = $region40
        $region39: #{tpu_custom_call.1} parent=31 // pred_region
          %214 = dma.done %s207, 64
        $region40: #{tpu_custom_call.1} parent=31 // pred_fallthru
          _
        %s215 = sand.u32 %s20, 1
        %s216 = scalar_lea.sflag [#allocation5], %s215
        %s217 = sand.u32 %s80, 1
        %s218 = smul.addr %s217, 2
        %s219 = scalar_lea.vmem [#allocation6], %s218
        // Predicated region
        $region41: #{tpu_custom_call.1} parent=31 // pred_check
          %p220 = pneg %p93
        $region42: #{tpu_custom_call.1} parent=31 // pred_check_branch
          %222 = sbr.rel (%p220) target = $region44
        $region43: #{tpu_custom_call.1} parent=31 // pred_region
          %223 = dma.done %s216, 32
        $region44: #{tpu_custom_call.1} parent=31 // pred_fallthru
          _
        %s224 = sand.u32 %s28, 1
        %s225 = scalar_lea.sflag [#allocation3], %s224
        %s226 = sand.u32 %s28, 1
        %s227 = scalar_lea.vmem [#allocation2], %s226
        %p228 = pneg %p41
        %p229 = pneg %p38
        %s230 = sand.u32 %s20, 1
        %s231 = scalar_lea.sflag [#allocation5], %s230
        %s232 = sand.u32 %s54, 1
        %s233 = smul.addr %s232, 4
        %s234 = scalar_lea.vmem [#allocation4], %s233
        %p235 = pneg %p67
        %p236 = pneg %p64
        %s237 = sand.u32 %s20, 1
        %s238 = scalar_lea.sflag [#allocation5], %s237
        %s239 = sand.u32 %s80, 1
        %s240 = smul.addr %s239, 2
        %s241 = scalar_lea.vmem [#allocation6], %s240
        %p242 = pneg %p93
        %p243 = pneg %p90
        %p244 = pneg %p119
        %p245 = pneg %p116
        %p246 = scmp.lt.s32.totalorder %s20, 1
        %s247 = scalar_select %p246, %s20, 1
        %s248 = smul.addr %s247, 8
        %s249 = scalar_lea.vmem %s3, %s248
        %p250 = scmp.lt.s32.totalorder %s20, 1
        %s251 = scalar_select %p250, %s20, 1
        %s252 = smul.addr %s251, 8
        %s253 = scalar_lea.vmem %s3, %s252
        %v254 = vld [vmem:[%s201] sm:$0x1]
        %v255 = vld [vmem:[%s210] sm:$0xf]
        %v257 = vlaneseq
        %v258 = vshrl.u32 %v257, 7
        %v259 = vsub.s32 0, %v258
        %v260 = vrot.slane %v254, %v259
        %v262 = vmul.f32 %v255, %v260
        %263 = vst [vmem:[%s253] sm:$0xf] %v262
        %v264 = vld [vmem:[%s219] sm:$0x3]
        %v265 = vmul.f32 %v264, %v260
        %266 = vst [vmem:[%s253 + $0x4] sm:$0x3] %v265
        %p267 = scmp.lt.s32.totalorder %s20, 1
        %s268 = scalar_select %p267, %s20, 1
        %s269 = smul.addr %s268, 8
        %s270 = scalar_lea.vmem %s3, %s269
        // Predicated region
        $region45: #{tpu_custom_call.1} parent=31 // pred_check
          %p271 = pneg %p116
        $region46: #{tpu_custom_call.1} parent=31 // pred_check_branch
          %273 = sbr.rel (%p271) target = $region48
        $region47: #{tpu_custom_call.1} parent=31 // pred_region
          _
        $region48: #{tpu_custom_call.1} parent=31 // pred_fallthru
          _
      $region32: #{tpu_custom_call.1} parent=5 // pred_fallthru
        _
      %p274 = scmp.le.s32.totalorder 2, %s15
      // Predicated region
      $region49: #{tpu_custom_call.1} parent=5 // pred_check
        %p275 = pneg %p274
      $region50: #{tpu_custom_call.1} parent=5 // pred_check_branch
        %277 = sbr.rel (%p275) target = $region52
      $region51: #{tpu_custom_call.1} parent=5 // pred_region
        %s278 = ssub.s32 %s15, 2
        // Predicated region
        $region53: #{tpu_custom_call.1} parent=51 // pred_check
          %p279 = pneg %p122
        $region54: #{tpu_custom_call.1} parent=51 // pred_check_branch
          %281 = sbr.rel (%p279) target = $region56
        $region55: #{tpu_custom_call.1} parent=51 // pred_region
          %p282 = scmp.lt.s32.totalorder %s21, 1
          %s283 = scalar_select %p282, %s21, 1
          %s284 = smul.addr %s283, 8
          %s285 = scalar_lea.vmem %s3, %s284
        $region56: #{tpu_custom_call.1} parent=51 // pred_fallthru
          _
      $region52: #{tpu_custom_call.1} parent=5 // pred_fallthru
        _
    $region6: #{tpu_custom_call.1} parent=1 // loop_footer
      %s19 = sadd.s32 1, %s15
    $region7: #{tpu_custom_call.1} parent=1 // loop_footer_branch
      %14 = sbr.rel target = $region3
    $region8: #{tpu_custom_call.1} parent=1 // loop_exit
      _
    %286 = vsyncpa [#allocation3], 1
    %s287 = scalar_lea.sflag [#allocation3], 1
    %288 = vsyncpa %s287, 1
    %289 = vsyncpa [#allocation5], 1
    %s290 = scalar_lea.sflag [#allocation5], 1
    %291 = vsyncpa %s290, 1

</llo_original>
